<compile_context>
chip_gen: v6e
topology: v6e:2x2x1
jax: 0.10.0
libtpu: 0.0.40
codegen_flags: <defaults>
</compile_context>

<pallas_src>
import jax
import jax.numpy as jnp
from jax.experimental import pallas as pl
from jax.experimental.pallas import tpu as pltpu

C = 10  # number of hidden-layer applications (shared weights), as in the PyTorch module


def _round_up(n, m):
    return ((n + m - 1) // m) * m


def _mlp_kernel(x_ref, slab_ref, o_ref):
    # x_ref:    (B, Hp)                padded activations (Hp = 128 here)
    # slab_ref: (3, Hp + Bpad, Hp)     per layer i:
    #                                    slab[i, :Hp, :]      = padded W_i (in x out)
    #                                    slab[i, Hp:Hp+B, :]  = bias_i broadcast to batch rows
    # o_ref:    (B, Hp)                lane-dense output (sliced to D_out outside)
    B = x_ref.shape[0]
    Hp = x_ref.shape[1]

    x = x_ref[...]

    # Static slices of the packed slab: no per-layer DMA, no in-kernel broadcasts.
    w1 = slab_ref[0, :Hp, :]
    b1 = slab_ref[0, Hp:Hp + B, :]
    wh = slab_ref[1, :Hp, :]
    bh = slab_ref[1, Hp:Hp + B, :]
    w2 = slab_ref[2, :Hp, :]
    b2 = slab_ref[2, Hp:Hp + B, :]

    # linear1 + ReLU
    h = jnp.maximum(jnp.dot(x, w1, preferred_element_type=jnp.float32) + b1, 0.0)

    # C x (hiddenlinears + ReLU), shared weights -- fully unrolled (C is static).
    for _ in range(C):
        h = jnp.maximum(jnp.dot(h, wh, preferred_element_type=jnp.float32) + bh, 0.0)

    # linear2 (no activation)
    o_ref[...] = jnp.dot(h, w2, preferred_element_type=jnp.float32) + b2


def two_layer_net(x, w1, b1, wh, bh, w2, b2):
    """x: (B, D_in); w*: (in, out) (pre-transposed); b*: (1, out). Returns (B, D_out) f32."""
    B, D_in = x.shape
    H = wh.shape[0]
    D_out = w2.shape[1]

    Hp = _round_up(max(D_in, H, D_out), 128)   # lane-dense padded feature width
    Bpad = _round_up(B, 8)                     # sublane-aligned bias block

    # Zero-pad activations to the lane-dense width (padded lanes stay exactly zero
    # through every layer because padded weight rows/cols and biases are zero).
    x_p = jnp.zeros((B, Hp), jnp.float32).at[:, :D_in].set(x)

    # Pack all weights + biases into one VMEM slab -> 2 input DMAs total.
    slab = jnp.zeros((3, Hp + Bpad, Hp), jnp.float32)
    slab = slab.at[0, :D_in, :H].set(w1)
    slab = slab.at[0, Hp:Hp + B, :H].set(jnp.broadcast_to(b1, (B, H)))
    slab = slab.at[1, :H, :H].set(wh)
    slab = slab.at[1, Hp:Hp + B, :H].set(jnp.broadcast_to(bh, (B, H)))
    slab = slab.at[2, :H, :D_out].set(w2)
    slab = slab.at[2, Hp:Hp + B, :D_out].set(jnp.broadcast_to(b2, (B, D_out)))

    cost = pl.CostEstimate(
        flops=2 * B * Hp * Hp * (C + 2),
        transcendentals=0,
        bytes_accessed=(x_p.size + slab.size + B * Hp) * 4,
    )

    y_full = pl.pallas_call(
        _mlp_kernel,
        out_shape=jax.ShapeDtypeStruct((B, Hp), jnp.float32),
        grid_spec=pltpu.PrefetchScalarGridSpec(
            num_scalar_prefetch=0,
            grid=(),  # tiny problem: single invocation, everything resident in VMEM
            in_specs=[
                pl.BlockSpec(x_p.shape, lambda: (0, 0)),
                pl.BlockSpec(slab.shape, lambda: (0, 0, 0)),
            ],
            out_specs=pl.BlockSpec((B, Hp), lambda: (0, 0)),
        ),
        cost_estimate=cost,
    )(x_p, slab)

    return y_full[:, :D_out]


def _init_linear(key, fan_in, fan_out):
    """Deterministic init mimicking torch.nn.Linear (uniform +/- 1/sqrt(fan_in)).
    Returns weight already transposed to (fan_in, fan_out) and bias (1, fan_out)."""
    kw, kb = jax.random.split(key)
    bound = 1.0 / jnp.sqrt(jnp.float32(fan_in))
    w = jax.random.uniform(kw, (fan_in, fan_out), jnp.float32, -bound, bound)
    b = jax.random.uniform(kb, (1, fan_out), jnp.float32, -bound, bound)
    return w, b


if __name__ == "__main__":
    # Small shapes consistent with the module: batch=8, D_in=32, H=32, D_out=16
    B, D_in, H, D_out = 8, 32, 32, 16

    key = jax.random.PRNGKey(0)
    k_x, k1, kh, k2 = jax.random.split(key, 4)

    x = jax.random.normal(k_x, (B, D_in), jnp.float32)
    w1, b1 = _init_linear(k1, D_in, H)
    wh, bh = _init_linear(kh, H, H)
    w2, b2 = _init_linear(k2, H, D_out)

    y = two_layer_net(x, w1, b1, wh, bh, w2, b2)
    y = jax.block_until_ready(y)

    # Pure-JAX reference check of the same semantics.
    def ref(x):
        h = jnp.maximum(x @ w1 + b1, 0.0)
        for _ in range(C):
            h = jnp.maximum(h @ wh + bh, 0.0)
        return h @ w2 + b2

    assert y.shape == (B, D_out)
    assert jnp.allclose(y, ref(x), atol=1e-5, rtol=1e-5)

    print("KERNEL_OK")
</pallas_src>

<mosaic_0001>
module attributes {stable_mosaic.version = 11 : i64} {
  func.func @_mlp_kernel(%arg0: memref<8x128xf32, #tpu.memory_space<vmem>>, %arg1: memref<3x136x128xf32, #tpu.memory_space<vmem>>, %arg2: memref<8x128xf32, #tpu.memory_space<vmem>>) attributes {dimension_semantics = [], scalar_prefetch = 0 : i64, scratch_operands = 0 : i64, tpu.core_type = #tpu.core_type<tc>} {
    %c0 = arith.constant 0 : index
    %c0_0 = arith.constant 0 : index
    %0 = vector.load %arg0[%c0, %c0_0] : memref<8x128xf32, #tpu.memory_space<vmem>>, vector<8x128xf32>
    %c0_1 = arith.constant 0 : index
    %c0_2 = arith.constant 0 : index
    %c0_3 = arith.constant 0 : index
    %1 = vector.load %arg1[%c0_1, %c0_2, %c0_3] : memref<3x136x128xf32, #tpu.memory_space<vmem>>, vector<1x128x128xf32>
    %2 = vector.shape_cast %1 : vector<1x128x128xf32> to vector<128x128xf32>
    %c0_4 = arith.constant 0 : index
    %c128 = arith.constant 128 : index
    %c0_5 = arith.constant 0 : index
    %3 = vector.load %arg1[%c0_4, %c128, %c0_5] : memref<3x136x128xf32, #tpu.memory_space<vmem>>, vector<1x8x128xf32>
    %4 = vector.shape_cast %3 : vector<1x8x128xf32> to vector<8x128xf32>
    %c1 = arith.constant 1 : index
    %c0_6 = arith.constant 0 : index
    %c0_7 = arith.constant 0 : index
    %5 = vector.load %arg1[%c1, %c0_6, %c0_7] : memref<3x136x128xf32, #tpu.memory_space<vmem>>, vector<1x128x128xf32>
    %6 = vector.shape_cast %5 : vector<1x128x128xf32> to vector<128x128xf32>
    %c1_8 = arith.constant 1 : index
    %c128_9 = arith.constant 128 : index
    %c0_10 = arith.constant 0 : index
    %7 = vector.load %arg1[%c1_8, %c128_9, %c0_10] : memref<3x136x128xf32, #tpu.memory_space<vmem>>, vector<1x8x128xf32>
    %8 = vector.shape_cast %7 : vector<1x8x128xf32> to vector<8x128xf32>
    %c2 = arith.constant 2 : index
    %c0_11 = arith.constant 0 : index
    %c0_12 = arith.constant 0 : index
    %9 = vector.load %arg1[%c2, %c0_11, %c0_12] : memref<3x136x128xf32, #tpu.memory_space<vmem>>, vector<1x128x128xf32>
    %10 = vector.shape_cast %9 : vector<1x128x128xf32> to vector<128x128xf32>
    %c2_13 = arith.constant 2 : index
    %c128_14 = arith.constant 128 : index
    %c0_15 = arith.constant 0 : index
    %11 = vector.load %arg1[%c2_13, %c128_14, %c0_15] : memref<3x136x128xf32, #tpu.memory_space<vmem>>, vector<1x8x128xf32>
    %12 = vector.shape_cast %11 : vector<1x8x128xf32> to vector<8x128xf32>
    %cst = arith.constant dense<0.000000e+00> : vector<8x128xf32>
    %13 = tpu.matmul %0, %2, %cst {dimension_numbers = #tpu.dot_dimension_numbers<[1], [0], [0], [1], [0, 0, 1, 1], [], []>} : vector<8x128xf32>, vector<128x128xf32>, vector<8x128xf32> -> vector<8x128xf32>
    %14 = arith.addf %13, %4 : vector<8x128xf32>
    %cst_16 = arith.constant 0.000000e+00 : f32
    %15 = vector.broadcast %cst_16 : f32 to vector<8x128xf32>
    %16 = arith.maximumf %14, %15 : vector<8x128xf32>
    %cst_17 = arith.constant dense<0.000000e+00> : vector<8x128xf32>
    %17 = tpu.matmul %16, %6, %cst_17 {dimension_numbers = #tpu.dot_dimension_numbers<[1], [0], [0], [1], [0, 0, 1, 1], [], []>} : vector<8x128xf32>, vector<128x128xf32>, vector<8x128xf32> -> vector<8x128xf32>
    %18 = arith.addf %17, %8 : vector<8x128xf32>
    %cst_18 = arith.constant 0.000000e+00 : f32
    %19 = vector.broadcast %cst_18 : f32 to vector<8x128xf32>
    %20 = arith.maximumf %18, %19 : vector<8x128xf32>
    %cst_19 = arith.constant dense<0.000000e+00> : vector<8x128xf32>
    %21 = tpu.matmul %20, %6, %cst_19 {dimension_numbers = #tpu.dot_dimension_numbers<[1], [0], [0], [1], [0, 0, 1, 1], [], []>} : vector<8x128xf32>, vector<128x128xf32>, vector<8x128xf32> -> vector<8x128xf32>
    %22 = arith.addf %21, %8 : vector<8x128xf32>
    %cst_20 = arith.constant 0.000000e+00 : f32
    %23 = vector.broadcast %cst_20 : f32 to vector<8x128xf32>
    %24 = arith.maximumf %22, %23 : vector<8x128xf32>
    %cst_21 = arith.constant dense<0.000000e+00> : vector<8x128xf32>
    %25 = tpu.matmul %24, %6, %cst_21 {dimension_numbers = #tpu.dot_dimension_numbers<[1], [0], [0], [1], [0, 0, 1, 1], [], []>} : vector<8x128xf32>, vector<128x128xf32>, vector<8x128xf32> -> vector<8x128xf32>
    %26 = arith.addf %25, %8 : vector<8x128xf32>
    %cst_22 = arith.constant 0.000000e+00 : f32
    %27 = vector.broadcast %cst_22 : f32 to vector<8x128xf32>
    %28 = arith.maximumf %26, %27 : vector<8x128xf32>
    %cst_23 = arith.constant dense<0.000000e+00> : vector<8x128xf32>
    %29 = tpu.matmul %28, %6, %cst_23 {dimension_numbers = #tpu.dot_dimension_numbers<[1], [0], [0], [1], [0, 0, 1, 1], [], []>} : vector<8x128xf32>, vector<128x128xf32>, vector<8x128xf32> -> vector<8x128xf32>
    %30 = arith.addf %29, %8 : vector<8x128xf32>
    %cst_24 = arith.constant 0.000000e+00 : f32
    %31 = vector.broadcast %cst_24 : f32 to vector<8x128xf32>
    %32 = arith.maximumf %30, %31 : vector<8x128xf32>
    %cst_25 = arith.constant dense<0.000000e+00> : vector<8x128xf32>
    %33 = tpu.matmul %32, %6, %cst_25 {dimension_numbers = #tpu.dot_dimension_numbers<[1], [0], [0], [1], [0, 0, 1, 1], [], []>} : vector<8x128xf32>, vector<128x128xf32>, vector<8x128xf32> -> vector<8x128xf32>
    %34 = arith.addf %33, %8 : vector<8x128xf32>
    %cst_26 = arith.constant 0.000000e+00 : f32
    %35 = vector.broadcast %cst_26 : f32 to vector<8x128xf32>
    %36 = arith.maximumf %34, %35 : vector<8x128xf32>
    %cst_27 = arith.constant dense<0.000000e+00> : vector<8x128xf32>
    %37 = tpu.matmul %36, %6, %cst_27 {dimension_numbers = #tpu.dot_dimension_numbers<[1], [0], [0], [1], [0, 0, 1, 1], [], []>} : vector<8x128xf32>, vector<128x128xf32>, vector<8x128xf32> -> vector<8x128xf32>
    %38 = arith.addf %37, %8 : vector<8x128xf32>
    %cst_28 = arith.constant 0.000000e+00 : f32
    %39 = vector.broadcast %cst_28 : f32 to vector<8x128xf32>
    %40 = arith.maximumf %38, %39 : vector<8x128xf32>
    %cst_29 = arith.constant dense<0.000000e+00> : vector<8x128xf32>
    %41 = tpu.matmul %40, %6, %cst_29 {dimension_numbers = #tpu.dot_dimension_numbers<[1], [0], [0], [1], [0, 0, 1, 1], [], []>} : vector<8x128xf32>, vector<128x128xf32>, vector<8x128xf32> -> vector<8x128xf32>
    %42 = arith.addf %41, %8 : vector<8x128xf32>
    %cst_30 = arith.constant 0.000000e+00 : f32
    %43 = vector.broadcast %cst_30 : f32 to vector<8x128xf32>
    %44 = arith.maximumf %42, %43 : vector<8x128xf32>
    %cst_31 = arith.constant dense<0.000000e+00> : vector<8x128xf32>
    %45 = tpu.matmul %44, %6, %cst_31 {dimension_numbers = #tpu.dot_dimension_numbers<[1], [0], [0], [1], [0, 0, 1, 1], [], []>} : vector<8x128xf32>, vector<128x128xf32>, vector<8x128xf32> -> vector<8x128xf32>
    %46 = arith.addf %45, %8 : vector<8x128xf32>
    %cst_32 = arith.constant 0.000000e+00 : f32
    %47 = vector.broadcast %cst_32 : f32 to vector<8x128xf32>
    %48 = arith.maximumf %46, %47 : vector<8x128xf32>
    %cst_33 = arith.constant dense<0.000000e+00> : vector<8x128xf32>
    %49 = tpu.matmul %48, %6, %cst_33 {dimension_numbers = #tpu.dot_dimension_numbers<[1], [0], [0], [1], [0, 0, 1, 1], [], []>} : vector<8x128xf32>, vector<128x128xf32>, vector<8x128xf32> -> vector<8x128xf32>
    %50 = arith.addf %49, %8 : vector<8x128xf32>
    %cst_34 = arith.constant 0.000000e+00 : f32
    %51 = vector.broadcast %cst_34 : f32 to vector<8x128xf32>
    %52 = arith.maximumf %50, %51 : vector<8x128xf32>
    %cst_35 = arith.constant dense<0.000000e+00> : vector<8x128xf32>
    %53 = tpu.matmul %52, %6, %cst_35 {dimension_numbers = #tpu.dot_dimension_numbers<[1], [0], [0], [1], [0, 0, 1, 1], [], []>} : vector<8x128xf32>, vector<128x128xf32>, vector<8x128xf32> -> vector<8x128xf32>
    %54 = arith.addf %53, %8 : vector<8x128xf32>
    %cst_36 = arith.constant 0.000000e+00 : f32
    %55 = vector.broadcast %cst_36 : f32 to vector<8x128xf32>
    %56 = arith.maximumf %54, %55 : vector<8x128xf32>
    %cst_37 = arith.constant dense<0.000000e+00> : vector<8x128xf32>
    %57 = tpu.matmul %56, %10, %cst_37 {dimension_numbers = #tpu.dot_dimension_numbers<[1], [0], [0], [1], [0, 0, 1, 1], [], []>} : vector<8x128xf32>, vector<128x128xf32>, vector<8x128xf32> -> vector<8x128xf32>
    %58 = arith.addf %57, %12 : vector<8x128xf32>
    %c0_38 = arith.constant 0 : index
    %c0_39 = arith.constant 0 : index
    %59 = vector.load %arg2[%c0_38, %c0_39] : memref<8x128xf32, #tpu.memory_space<vmem>>, vector<8x128xf32>
    tpu.vector_store %arg2[%c0_38, %c0_39], %58 {strides = array<i32>} : memref<8x128xf32, #tpu.memory_space<vmem>>, vector<8x128xf32>,
    return
  }
}

</mosaic_0001>

<llo_original>
// kernel: tpu_custom_call.1
$region0: #{tpu_custom_call.1}
  #allocation0 [shape = 'u32[]', space=smem, size = 0x4, offset = 0x4, fixed_abs, tag = 'smem constant byte address 0x4 - core index']
  #allocation1 [shape = 'u32[144,128]{1,0:T(1,128)}', space=vmem, size = 0x12000, scoped, tag = 'internal scratch']
  %s0 = inlined_call_operand.hbm [shape: f32[8,128], index: 0, kind: input, shape index: {}]
  %s1 = inlined_call_operand.hbm [shape: f32[3,136,128], index: 1, kind: input, shape index: {}]
  %s2 = inlined_call_operand.hbm [shape: f32[8,128], index: 2, kind: output, shape index: {}]
  %s3 = sld [smem:[#allocation0]]
  $region26: #{tpu_custom_call.1} parent=0
    _
  %s5 = ssub.s32 1, %s3
  %s6 = scalar_select 0, %s5, %s3
  $region1: #{tpu_custom_call.1} parent=0
    #allocation2 [shape = 'u8[4096]{0}', space=vmem, size = 0x1000, scoped, tag = 'input window, operand 0, single buffered']
    #allocation3 [shape = 's32[1]{0}', space=sflag, size = 0x4, scoped, tag = 'scoped memory for tpu_custom_call.1']
    #allocation4 [shape = 's32[1]{0}', space=sflag, size = 0x4, scoped, tag = 'scoped memory for tpu_custom_call.1']
    #allocation5 [shape = 'u8[208896]{0}', space=vmem, size = 0x33000, scoped, tag = 'input window, operand 1, single buffered']
    #allocation6 [shape = 's32[1]{0}', space=sflag, size = 0x4, scoped, tag = 'scoped memory for tpu_custom_call.1']
    #allocation7 [shape = 'u8[4096]{0}', space=vmem, size = 0x1000, scoped, tag = 'output window, operand 0, single buffered']
    %7 = vsyncpa [#allocation3], 0
    %8 = vsyncpa [#allocation6], 0
    %9 = vsyncpa [#allocation4], 0
    // Predicated region
    $region2: #{tpu_custom_call.1} parent=1 // pred_check
      _
    $region3: #{tpu_custom_call.1} parent=1 // pred_check_branch
      %11 = sbr.rel (0) target = $region5
    $region4: #{tpu_custom_call.1} parent=1 // pred_region
      %s13 = ssub.s32 128, 128
      %14 = vsyncadd [#allocation3], %s13
      %s16 = sshll.u32 [#allocation2], 4
      %s17 = int_to_ptr.vmem [resolvable:$true] %s16
      %19 = dma.hbm_to_vmem [thread:$0]  %s0, 128, %s17, [#allocation3]
    $region5: #{tpu_custom_call.1} parent=1 // pred_fallthru
      _
    // Predicated region
    $region6: #{tpu_custom_call.1} parent=1 // pred_check
      _
    $region7: #{tpu_custom_call.1} parent=1 // pred_check_branch
      %21 = sbr.rel (0) target = $region9
    $region8: #{tpu_custom_call.1} parent=1 // pred_region
      %s23 = ssub.s32 6528, 6528
      %24 = vsyncadd [#allocation6], %s23
      %s25 = sshll.u32 [#allocation5], 4
      %s26 = int_to_ptr.vmem [resolvable:$true] %s25
      %31 = dma.hbm_to_vmem [thread:$0]  %s1, 6528, %s26, [#allocation6], 128, 128, 8
    $region9: #{tpu_custom_call.1} parent=1 // pred_fallthru
      _
    // Predicated region
    $region10: #{tpu_custom_call.1} parent=1 // pred_check
      _
    $region11: #{tpu_custom_call.1} parent=1 // pred_check_branch
      %33 = sbr.rel (0) target = $region13
    $region12: #{tpu_custom_call.1} parent=1 // pred_region
      %34 = dma.done [#allocation3], 128
    $region13: #{tpu_custom_call.1} parent=1 // pred_fallthru
      _
    // Predicated region
    $region14: #{tpu_custom_call.1} parent=1 // pred_check
      _
    $region15: #{tpu_custom_call.1} parent=1 // pred_check_branch
      %36 = sbr.rel (0) target = $region17
    $region16: #{tpu_custom_call.1} parent=1 // pred_region
      %37 = dma.done [#allocation6], 6528
    $region17: #{tpu_custom_call.1} parent=1 // pred_fallthru
      _
    %v38 = vld [vmem:[#allocation2] sm:$0xff]
    %v39 = vld [vmem:[#allocation5] sm:$0xff]
    %v40 = vld [vmem:[#allocation5 + $0x8] sm:$0xff]
    %v41 = vld [vmem:[#allocation5 + $0x10] sm:$0xff]
    %v42 = vld [vmem:[#allocation5 + $0x18] sm:$0xff]
    %v43 = vld [vmem:[#allocation5 + $0x20] sm:$0xff]
    %v44 = vld [vmem:[#allocation5 + $0x28] sm:$0xff]
    %v45 = vld [vmem:[#allocation5 + $0x30] sm:$0xff]
    %v46 = vld [vmem:[#allocation5 + $0x38] sm:$0xff]
    %v47 = vld [vmem:[#allocation5 + $0x40] sm:$0xff]
    %v48 = vld [vmem:[#allocation5 + $0x48] sm:$0xff]
    %v49 = vld [vmem:[#allocation5 + $0x50] sm:$0xff]
    %v50 = vld [vmem:[#allocation5 + $0x58] sm:$0xff]
    %v51 = vld [vmem:[#allocation5 + $0x60] sm:$0xff]
    %v52 = vld [vmem:[#allocation5 + $0x68] sm:$0xff]
    %v53 = vld [vmem:[#allocation5 + $0x70] sm:$0xff]
    %v54 = vld [vmem:[#allocation5 + $0x78] sm:$0xff]
    %v55 = vld [vmem:[#allocation5 + $0x80] sm:$0xff]
    %s56 = scalar_lea.vmem [#allocation5], 136
    %v57 = vld [vmem:[%s56] sm:$0xff]
    %v58 = vld [vmem:[%s56 + $0x8] sm:$0xff]
    %v59 = vld [vmem:[%s56 + $0x10] sm:$0xff]
    %v60 = vld [vmem:[%s56 + $0x18] sm:$0xff]
    %v61 = vld [vmem:[%s56 + $0x20] sm:$0xff]
    %v62 = vld [vmem:[%s56 + $0x28] sm:$0xff]
    %v63 = vld [vmem:[%s56 + $0x30] sm:$0xff]
    %v64 = vld [vmem:[%s56 + $0x38] sm:$0xff]
    %v65 = vld [vmem:[%s56 + $0x40] sm:$0xff]
    %v66 = vld [vmem:[%s56 + $0x48] sm:$0xff]
    %v67 = vld [vmem:[%s56 + $0x50] sm:$0xff]
    %v68 = vld [vmem:[%s56 + $0x58] sm:$0xff]
    %v69 = vld [vmem:[%s56 + $0x60] sm:$0xff]
    %v70 = vld [vmem:[%s56 + $0x68] sm:$0xff]
    %v71 = vld [vmem:[%s56 + $0x70] sm:$0xff]
    %v72 = vld [vmem:[%s56 + $0x78] sm:$0xff]
    %v73 = vld [vmem:[%s56 + $0x80] sm:$0xff]
    %s74 = scalar_lea.vmem [#allocation5], 272
    %v75 = vld [vmem:[%s74] sm:$0xff]
    %v76 = vld [vmem:[%s74 + $0x8] sm:$0xff]
    %v77 = vld [vmem:[%s74 + $0x10] sm:$0xff]
    %v78 = vld [vmem:[%s74 + $0x18] sm:$0xff]
    %v79 = vld [vmem:[%s74 + $0x20] sm:$0xff]
    %v80 = vld [vmem:[%s74 + $0x28] sm:$0xff]
    %v81 = vld [vmem:[%s74 + $0x30] sm:$0xff]
    %v82 = vld [vmem:[%s74 + $0x38] sm:$0xff]
    %v83 = vld [vmem:[%s74 + $0x40] sm:$0xff]
    %v84 = vld [vmem:[%s74 + $0x48] sm:$0xff]
    %v85 = vld [vmem:[%s74 + $0x50] sm:$0xff]
    %v86 = vld [vmem:[%s74 + $0x58] sm:$0xff]
    %v87 = vld [vmem:[%s74 + $0x60] sm:$0xff]
    %v88 = vld [vmem:[%s74 + $0x68] sm:$0xff]
    %v89 = vld [vmem:[%s74 + $0x70] sm:$0xff]
    %v90 = vld [vmem:[%s74 + $0x78] sm:$0xff]
    %v91 = vld [vmem:[%s74 + $0x80] sm:$0xff]
    %92 = vmatprep.subr.mxu0 0.0
    %93 = vmatpush1.msra.mxu0 %v54
    %94 = vmatprep.subr.mxu0 0.0
    %95 = vmatpush1.msra.mxu0 %v53
    %96 = vmatprep.subr.mxu0 0.0
    %97 = vmatpush1.msra.mxu0 %v52
    %98 = vmatprep.subr.mxu0 0.0
    %99 = vmatpush1.msra.mxu0 %v51
    %100 = vmatprep.subr.mxu0 0.0
    %101 = vmatpush1.msra.mxu0 %v50
    %102 = vmatprep.subr.mxu0 0.0
    %103 = vmatpush1.msra.mxu0 %v49
    %104 = vmatprep.subr.mxu0 0.0
    %105 = vmatpush1.msra.mxu0 %v48
    %106 = vmatprep.subr.mxu0 0.0
    %107 = vmatpush1.msra.mxu0 %v47
    %108 = vmatprep.subr.mxu0 0.0
    %109 = vmatpush1.msra.mxu0 %v46
    %110 = vmatprep.subr.mxu0 0.0
    %111 = vmatpush1.msra.mxu0 %v45
    %112 = vmatprep.subr.mxu0 0.0
    %113 = vmatpush1.msra.mxu0 %v44
    %114 = vmatprep.subr.mxu0 0.0
    %115 = vmatpush1.msra.mxu0 %v43
    %116 = vmatprep.subr.mxu0 0.0
    %117 = vmatpush1.msra.mxu0 %v42
    %118 = vmatprep.subr.mxu0 0.0
    %119 = vmatpush1.msra.mxu0 %v41
    %120 = vmatprep.subr.mxu0 0.0
    %121 = vmatpush1.msra.mxu0 %v40
    %122 = vmatprep.subr.mxu0 0.0
    %123 = vmatpush1.msra.mxu0 %v39
    %124 = vmatprep.subr.mxu0 0.0
    %125 = vmatpush2.msra.mxu0 0.0
    %126 = vmatprep.subr.mxu0 0.0
    %127 = vmatpush2.msra.mxu0 0.0
    %128 = vmatprep.subr.mxu0 0.0
    %129 = vmatpush2.msra.mxu0 0.0
    %130 = vmatprep.subr.mxu0 0.0
    %131 = vmatpush2.msra.mxu0 0.0
    %132 = vmatprep.subr.mxu0 0.0
    %133 = vmatpush2.msra.mxu0 0.0
    %134 = vmatprep.subr.mxu0 0.0
    %135 = vmatpush2.msra.mxu0 0.0
    %136 = vmatprep.subr.mxu0 0.0
    %137 = vmatpush2.msra.mxu0 0.0
    %138 = vmatprep.subr.mxu0 0.0
    %139 = vmatpush2.msra.mxu0 0.0
    %140 = vmatprep.subr.mxu0 0.0
    %141 = vmatpush2.msra.mxu0 0.0
    %142 = vmatprep.subr.mxu0 0.0
    %143 = vmatpush2.msra.mxu0 0.0
    %144 = vmatprep.subr.mxu0 0.0
    %145 = vmatpush2.msra.mxu0 0.0
    %146 = vmatprep.subr.mxu0 0.0
    %147 = vmatpush2.msra.mxu0 0.0
    %148 = vmatprep.subr.mxu0 0.0
    %149 = vmatpush2.msra.mxu0 0.0
    %150 = vmatprep.subr.mxu0 0.0
    %151 = vmatpush2.msra.mxu0 0.0
    %152 = vmatprep.subr.mxu0 0.0
    %153 = vmatpush2.msra.mxu0 0.0
    %154 = vmatprep.subr.mxu0 0.0
    %155 = vmatpush2.msra.mxu0 0.0
    %156 = vmatprep.mubr.f32.mxu0 0.0
    %157 = vmatmul.mubr.f32.gmra.mxu0 %v38
    %v158 = vpop.f32.mrf.mxu0
    %v159 = vadd.f32 %v55, %v158
    %v160 = vpop.f32.mrf.mxu0
    %161 = vdwg.mxu0
    %v162 = vmax.f32 %v159, 0.0
    %163 = vmatprep.subr.mxu0 0.0
    %164 = vmatpush1.msra.mxu0 %v72
    %165 = vmatprep.subr.mxu0 0.0
    %166 = vmatpush1.msra.mxu0 %v71
    %167 = vmatprep.subr.mxu0 0.0
    %168 = vmatpush1.msra.mxu0 %v70
    %169 = vmatprep.subr.mxu0 0.0
    %170 = vmatpush1.msra.mxu0 %v69
    %171 = vmatprep.subr.mxu0 0.0
    %172 = vmatpush1.msra.mxu0 %v68
    %173 = vmatprep.subr.mxu0 0.0
    %174 = vmatpush1.msra.mxu0 %v67
    %175 = vmatprep.subr.mxu0 0.0
    %176 = vmatpush1.msra.mxu0 %v66
    %177 = vmatprep.subr.mxu0 0.0
    %178 = vmatpush1.msra.mxu0 %v65
    %179 = vmatprep.subr.mxu0 0.0
    %180 = vmatpush1.msra.mxu0 %v64
    %181 = vmatprep.subr.mxu0 0.0
    %182 = vmatpush1.msra.mxu0 %v63
    %183 = vmatprep.subr.mxu0 0.0
    %184 = vmatpush1.msra.mxu0 %v62
    %185 = vmatprep.subr.mxu0 0.0
    %186 = vmatpush1.msra.mxu0 %v61
    %187 = vmatprep.subr.mxu0 0.0
    %188 = vmatpush1.msra.mxu0 %v60
    %189 = vmatprep.subr.mxu0 0.0
    %190 = vmatpush1.msra.mxu0 %v59
    %191 = vmatprep.subr.mxu0 0.0
    %192 = vmatpush1.msra.mxu0 %v58
    %193 = vmatprep.subr.mxu0 0.0
    %194 = vmatpush1.msra.mxu0 %v57
    %195 = vmatprep.subr.mxu0 0.0
    %196 = vmatpush2.msra.mxu0 0.0
    %197 = vmatprep.subr.mxu0 0.0
    %198 = vmatpush2.msra.mxu0 0.0
    %199 = vmatprep.subr.mxu0 0.0
    %200 = vmatpush2.msra.mxu0 0.0
    %201 = vmatprep.subr.mxu0 0.0
    %202 = vmatpush2.msra.mxu0 0.0
    %203 = vmatprep.subr.mxu0 0.0
    %204 = vmatpush2.msra.mxu0 0.0
    %205 = vmatprep.subr.mxu0 0.0
    %206 = vmatpush2.msra.mxu0 0.0
    %207 = vmatprep.subr.mxu0 0.0
    %208 = vmatpush2.msra.mxu0 0.0
    %209 = vmatprep.subr.mxu0 0.0
    %210 = vmatpush2.msra.mxu0 0.0
    %211 = vmatprep.subr.mxu0 0.0
    %212 = vmatpush2.msra.mxu0 0.0
    %213 = vmatprep.subr.mxu0 0.0
    %214 = vmatpush2.msra.mxu0 0.0
    %215 = vmatprep.subr.mxu0 0.0
    %216 = vmatpush2.msra.mxu0 0.0
    %217 = vmatprep.subr.mxu0 0.0
    %218 = vmatpush2.msra.mxu0 0.0
    %219 = vmatprep.subr.mxu0 0.0
    %220 = vmatpush2.msra.mxu0 0.0
    %221 = vmatprep.subr.mxu0 0.0
    %222 = vmatpush2.msra.mxu0 0.0
    %223 = vmatprep.subr.mxu0 0.0
    %224 = vmatpush2.msra.mxu0 0.0
    %225 = vmatprep.subr.mxu0 0.0
    %226 = vmatpush2.msra.mxu0 0.0
    %227 = vmatprep.mubr.f32.mxu0 0.0
    %228 = vmatmul.mubr.f32.gmra.mxu0 %v162
    %v229 = vpop.f32.mrf.mxu0
    %v230 = vadd.f32 %v73, %v229
    %v231 = vpop.f32.mrf.mxu0
    %232 = vdwg.mxu0
    %v233 = vmax.f32 %v230, 0.0
    %234 = vmatprep.subr.mxu0 0.0
    %235 = vmatpush1.msra.mxu0 %v72
    %236 = vmatprep.subr.mxu0 0.0
    %237 = vmatpush1.msra.mxu0 %v71
    %238 = vmatprep.subr.mxu0 0.0
    %239 = vmatpush1.msra.mxu0 %v70
    %240 = vmatprep.subr.mxu0 0.0
    %241 = vmatpush1.msra.mxu0 %v69
    %242 = vmatprep.subr.mxu0 0.0
    %243 = vmatpush1.msra.mxu0 %v68
    %244 = vmatprep.subr.mxu0 0.0
    %245 = vmatpush1.msra.mxu0 %v67
    %246 = vmatprep.subr.mxu0 0.0
    %247 = vmatpush1.msra.mxu0 %v66
    %248 = vmatprep.subr.mxu0 0.0
    %249 = vmatpush1.msra.mxu0 %v65
    %250 = vmatprep.subr.mxu0 0.0
    %251 = vmatpush1.msra.mxu0 %v64
    %252 = vmatprep.subr.mxu0 0.0
    %253 = vmatpush1.msra.mxu0 %v63
    %254 = vmatprep.subr.mxu0 0.0
    %255 = vmatpush1.msra.mxu0 %v62
    %256 = vmatprep.subr.mxu0 0.0
    %257 = vmatpush1.msra.mxu0 %v61
    %258 = vmatprep.subr.mxu0 0.0
    %259 = vmatpush1.msra.mxu0 %v60
    %260 = vmatprep.subr.mxu0 0.0
    %261 = vmatpush1.msra.mxu0 %v59
    %262 = vmatprep.subr.mxu0 0.0
    %263 = vmatpush1.msra.mxu0 %v58
    %264 = vmatprep.subr.mxu0 0.0
    %265 = vmatpush1.msra.mxu0 %v57
    %266 = vmatprep.subr.mxu0 0.0
    %267 = vmatpush2.msra.mxu0 0.0
    %268 = vmatprep.subr.mxu0 0.0
    %269 = vmatpush2.msra.mxu0 0.0
    %270 = vmatprep.subr.mxu0 0.0
    %271 = vmatpush2.msra.mxu0 0.0
    %272 = vmatprep.subr.mxu0 0.0
    %273 = vmatpush2.msra.mxu0 0.0
    %274 = vmatprep.subr.mxu0 0.0
    %275 = vmatpush2.msra.mxu0 0.0
    %276 = vmatprep.subr.mxu0 0.0
    %277 = vmatpush2.msra.mxu0 0.0
    %278 = vmatprep.subr.mxu0 0.0
    %279 = vmatpush2.msra.mxu0 0.0
    %280 = vmatprep.subr.mxu0 0.0
    %281 = vmatpush2.msra.mxu0 0.0
    %282 = vmatprep.subr.mxu0 0.0
    %283 = vmatpush2.msra.mxu0 0.0
    %284 = vmatprep.subr.mxu0 0.0
    %285 = vmatpush2.msra.mxu0 0.0
    %286 = vmatprep.subr.mxu0 0.0
    %287 = vmatpush2.msra.mxu0 0.0
    %288 = vmatprep.subr.mxu0 0.0
    %289 = vmatpush2.msra.mxu0 0.0
    %290 = vmatprep.subr.mxu0 0.0
    %291 = vmatpush2.msra.mxu0 0.0
    %292 = vmatprep.subr.mxu0 0.0
    %293 = vmatpush2.msra.mxu0 0.0
    %294 = vmatprep.subr.mxu0 0.0
    %295 = vmatpush2.msra.mxu0 0.0
    %296 = vmatprep.subr.mxu0 0.0
    %297 = vmatpush2.msra.mxu0 0.0
    %298 = vmatprep.mubr.f32.mxu0 0.0
    %299 = vmatmul.mubr.f32.gmra.mxu0 %v233
    %v300 = vpop.f32.mrf.mxu0
    %v301 = vadd.f32 %v73, %v300
    %v302 = vpop.f32.mrf.mxu0
    %303 = vdwg.mxu0
    %v304 = vmax.f32 %v301, 0.0
    %305 = vmatprep.subr.mxu0 0.0
    %306 = vmatpush1.msra.mxu0 %v72
    %307 = vmatprep.subr.mxu0 0.0
    %308 = vmatpush1.msra.mxu0 %v71
    %309 = vmatprep.subr.mxu0 0.0
    %310 = vmatpush1.msra.mxu0 %v70
    %311 = vmatprep.subr.mxu0 0.0
    %312 = vmatpush1.msra.mxu0 %v69
    %313 = vmatprep.subr.mxu0 0.0
    %314 = vmatpush1.msra.mxu0 %v68
    %315 = vmatprep.subr.mxu0 0.0
    %316 = vmatpush1.msra.mxu0 %v67
    %317 = vmatprep.subr.mxu0 0.0
    %318 = vmatpush1.msra.mxu0 %v66
    %319 = vmatprep.subr.mxu0 0.0
    %320 = vmatpush1.msra.mxu0 %v65
    %321 = vmatprep.subr.mxu0 0.0
    %322 = vmatpush1.msra.mxu0 %v64
    %323 = vmatprep.subr.mxu0 0.0
    %324 = vmatpush1.msra.mxu0 %v63
    %325 = vmatprep.subr.mxu0 0.0
    %326 = vmatpush1.msra.mxu0 %v62
    %327 = vmatprep.subr.mxu0 0.0
    %328 = vmatpush1.msra.mxu0 %v61
    %329 = vmatprep.subr.mxu0 0.0
    %330 = vmatpush1.msra.mxu0 %v60
    %331 = vmatprep.subr.mxu0 0.0
    %332 = vmatpush1.msra.mxu0 %v59
    %333 = vmatprep.subr.mxu0 0.0
    %334 = vmatpush1.msra.mxu0 %v58
    %335 = vmatprep.subr.mxu0 0.0
    %336 = vmatpush1.msra.mxu0 %v57
    %337 = vmatprep.subr.mxu0 0.0
    %338 = vmatpush2.msra.mxu0 0.0
    %339 = vmatprep.subr.mxu0 0.0
    %340 = vmatpush2.msra.mxu0 0.0
    %341 = vmatprep.subr.mxu0 0.0
    %342 = vmatpush2.msra.mxu0 0.0
    %343 = vmatprep.subr.mxu0 0.0
    %344 = vmatpush2.msra.mxu0 0.0
    %345 = vmatprep.subr.mxu0 0.0
    %346 = vmatpush2.msra.mxu0 0.0
    %347 = vmatprep.subr.mxu0 0.0
    %348 = vmatpush2.msra.mxu0 0.0
    %349 = vmatprep.subr.mxu0 0.0
    %350 = vmatpush2.msra.mxu0 0.0
    %351 = vmatprep.subr.mxu0 0.0
    %352 = vmatpush2.msra.mxu0 0.0
    %353 = vmatprep.subr.mxu0 0.0
    %354 = vmatpush2.msra.mxu0 0.0
    %355 = vmatprep.subr.mxu0 0.0
    %356 = vmatpush2.msra.mxu0 0.0
    %357 = vmatprep.subr.mxu0 0.0
    %358 = vmatpush2.msra.mxu0 0.0
    %359 = vmatprep.subr.mxu0 0.0
    %360 = vmatpush2.msra.mxu0 0.0
    %361 = vmatprep.subr.mxu0 0.0
    %362 = vmatpush2.msra.mxu0 0.0
    %363 = vmatprep.subr.mxu0 0.0
    %364 = vmatpush2.msra.mxu0 0.0
    %365 = vmatprep.subr.mxu0 0.0
    %366 = vmatpush2.msra.mxu0 0.0
    %367 = vmatprep.subr.mxu0 0.0
    %368 = vmatpush2.msra.mxu0 0.0
    %369 = vmatprep.mubr.f32.mxu0 0.0
    %370 = vmatmul.mubr.f32.gmra.mxu0 %v304
    %v371 = vpop.f32.mrf.mxu0
    %v372 = vadd.f32 %v73, %v371
    %v373 = vpop.f32.mrf.mxu0
    %374 = vdwg.mxu0
    %v375 = vmax.f32 %v372, 0.0
    %376 = vmatprep.subr.mxu0 0.0
    %377 = vmatpush1.msra.mxu0 %v72
    %378 = vmatprep.subr.mxu0 0.0
    %379 = vmatpush1.msra.mxu0 %v71
    %380 = vmatprep.subr.mxu0 0.0
    %381 = vmatpush1.msra.mxu0 %v70
    %382 = vmatprep.subr.mxu0 0.0
    %383 = vmatpush1.msra.mxu0 %v69
    %384 = vmatprep.subr.mxu0 0.0
    %385 = vmatpush1.msra.mxu0 %v68
    %386 = vmatprep.subr.mxu0 0.0
    %387 = vmatpush1.msra.mxu0 %v67
    %388 = vmatprep.subr.mxu0 0.0
    %389 = vmatpush1.msra.mxu0 %v66
    %390 = vmatprep.subr.mxu0 0.0
    %391 = vmatpush1.msra.mxu0 %v65
    %392 = vmatprep.subr.mxu0 0.0
    %393 = vmatpush1.msra.mxu0 %v64
    %394 = vmatprep.subr.mxu0 0.0
    %395 = vmatpush1.msra.mxu0 %v63
    %396 = vmatprep.subr.mxu0 0.0
    %397 = vmatpush1.msra.mxu0 %v62
    %398 = vmatprep.subr.mxu0 0.0
    %399 = vmatpush1.msra.mxu0 %v61
    %400 = vmatprep.subr.mxu0 0.0
    %401 = vmatpush1.msra.mxu0 %v60
    %402 = vmatprep.subr.mxu0 0.0
    %403 = vmatpush1.msra.mxu0 %v59
    %404 = vmatprep.subr.mxu0 0.0
    %405 = vmatpush1.msra.mxu0 %v58
    %406 = vmatprep.subr.mxu0 0.0
    %407 = vmatpush1.msra.mxu0 %v57
    %408 = vmatprep.subr.mxu0 0.0
    %409 = vmatpush2.msra.mxu0 0.0
    %410 = vmatprep.subr.mxu0 0.0
    %411 = vmatpush2.msra.mxu0 0.0
    %412 = vmatprep.subr.mxu0 0.0
    %413 = vmatpush2.msra.mxu0 0.0
    %414 = vmatprep.subr.mxu0 0.0
    %415 = vmatpush2.msra.mxu0 0.0
    %416 = vmatprep.subr.mxu0 0.0
    %417 = vmatpush2.msra.mxu0 0.0
    %418 = vmatprep.subr.mxu0 0.0
    %419 = vmatpush2.msra.mxu0 0.0
    %420 = vmatprep.subr.mxu0 0.0
    %421 = vmatpush2.msra.mxu0 0.0
    %422 = vmatprep.subr.mxu0 0.0
    %423 = vmatpush2.msra.mxu0 0.0
    %424 = vmatprep.subr.mxu0 0.0
    %425 = vmatpush2.msra.mxu0 0.0
    %426 = vmatprep.subr.mxu0 0.0
    %427 = vmatpush2.msra.mxu0 0.0
    %428 = vmatprep.subr.mxu0 0.0
    %429 = vmatpush2.msra.mxu0 0.0
    %430 = vmatprep.subr.mxu0 0.0
    %431 = vmatpush2.msra.mxu0 0.0
    %432 = vmatprep.subr.mxu0 0.0
    %433 = vmatpush2.msra.mxu0 0.0
    %434 = vmatprep.subr.mxu0 0.0
    %435 = vmatpush2.msra.mxu0 0.0
    %436 = vmatprep.subr.mxu0 0.0
    %437 = vmatpush2.msra.mxu0 0.0
    %438 = vmatprep.subr.mxu0 0.0
    %439 = vmatpush2.msra.mxu0 0.0
    %440 = vmatprep.mubr.f32.mxu0 0.0
    %441 = vmatmul.mubr.f32.gmra.mxu0 %v375
    %v442 = vpop.f32.mrf.mxu0
    %v443 = vadd.f32 %v73, %v442
    %v444 = vpop.f32.mrf.mxu0
    %445 = vdwg.mxu0
    %v446 = vmax.f32 %v443, 0.0
    %447 = vmatprep.subr.mxu0 0.0
    %448 = vmatpush1.msra.mxu0 %v72
    %449 = vmatprep.subr.mxu0 0.0
    %450 = vmatpush1.msra.mxu0 %v71
    %451 = vmatprep.subr.mxu0 0.0
    %452 = vmatpush1.msra.mxu0 %v70
    %453 = vmatprep.subr.mxu0 0.0
    %454 = vmatpush1.msra.mxu0 %v69
    %455 = vmatprep.subr.mxu0 0.0
    %456 = vmatpush1.msra.mxu0 %v68
    %457 = vmatprep.subr.mxu0 0.0
    %458 = vmatpush1.msra.mxu0 %v67
    %459 = vmatprep.subr.mxu0 0.0
    %460 = vmatpush1.msra.mxu0 %v66
    %461 = vmatprep.subr.mxu0 0.0
    %462 = vmatpush1.msra.mxu0 %v65
    %463 = vmatprep.subr.mxu0 0.0
    %464 = vmatpush1.msra.mxu0 %v64
    %465 = vmatprep.subr.mxu0 0.0
    %466 = vmatpush1.msra.mxu0 %v63
    %467 = vmatprep.subr.mxu0 0.0
    %468 = vmatpush1.msra.mxu0 %v62
    %469 = vmatprep.subr.mxu0 0.0
    %470 = vmatpush1.msra.mxu0 %v61
    %471 = vmatprep.subr.mxu0 0.0
    %472 = vmatpush1.msra.mxu0 %v60
    %473 = vmatprep.subr.mxu0 0.0
    %474 = vmatpush1.msra.mxu0 %v59
    %475 = vmatprep.subr.mxu0 0.0
    %476 = vmatpush1.msra.mxu0 %v58
    %477 = vmatprep.subr.mxu0 0.0
    %478 = vmatpush1.msra.mxu0 %v57
    %479 = vmatprep.subr.mxu0 0.0
    %480 = vmatpush2.msra.mxu0 0.0
    %481 = vmatprep.subr.mxu0 0.0
    %482 = vmatpush2.msra.mxu0 0.0
    %483 = vmatprep.subr.mxu0 0.0
    %484 = vmatpush2.msra.mxu0 0.0
    %485 = vmatprep.subr.mxu0 0.0
    %486 = vmatpush2.msra.mxu0 0.0
    %487 = vmatprep.subr.mxu0 0.0
    %488 = vmatpush2.msra.mxu0 0.0
    %489 = vmatprep.subr.mxu0 0.0
    %490 = vmatpush2.msra.mxu0 0.0
    %491 = vmatprep.subr.mxu0 0.0
    %492 = vmatpush2.msra.mxu0 0.0
    %493 = vmatprep.subr.mxu0 0.0
    %494 = vmatpush2.msra.mxu0 0.0
    %495 = vmatprep.subr.mxu0 0.0
    %496 = vmatpush2.msra.mxu0 0.0
    %497 = vmatprep.subr.mxu0 0.0
    %498 = vmatpush2.msra.mxu0 0.0
    %499 = vmatprep.subr.mxu0 0.0
    %500 = vmatpush2.msra.mxu0 0.0
    %501 = vmatprep.subr.mxu0 0.0
    %502 = vmatpush2.msra.mxu0 0.0
    %503 = vmatprep.subr.mxu0 0.0
    %504 = vmatpush2.msra.mxu0 0.0
    %505 = vmatprep.subr.mxu0 0.0
    %506 = vmatpush2.msra.mxu0 0.0
    %507 = vmatprep.subr.mxu0 0.0
    %508 = vmatpush2.msra.mxu0 0.0
    %509 = vmatprep.subr.mxu0 0.0
    %510 = vmatpush2.msra.mxu0 0.0
    %511 = vmatprep.mubr.f32.mxu0 0.0
    %512 = vmatmul.mubr.f32.gmra.mxu0 %v446
    %v513 = vpop.f32.mrf.mxu0
    %v514 = vadd.f32 %v73, %v513
    %v515 = vpop.f32.mrf.mxu0
    %516 = vdwg.mxu0
    %v517 = vmax.f32 %v514, 0.0
    %518 = vmatprep.subr.mxu0 0.0
    %519 = vmatpush1.msra.mxu0 %v72
    %520 = vmatprep.subr.mxu0 0.0
    %521 = vmatpush1.msra.mxu0 %v71
    %522 = vmatprep.subr.mxu0 0.0
    %523 = vmatpush1.msra.mxu0 %v70
    %524 = vmatprep.subr.mxu0 0.0
    %525 = vmatpush1.msra.mxu0 %v69
    %526 = vmatprep.subr.mxu0 0.0
    %527 = vmatpush1.msra.mxu0 %v68
    %528 = vmatprep.subr.mxu0 0.0
    %529 = vmatpush1.msra.mxu0 %v67
    %530 = vmatprep.subr.mxu0 0.0
    %531 = vmatpush1.msra.mxu0 %v66
    %532 = vmatprep.subr.mxu0 0.0
    %533 = vmatpush1.msra.mxu0 %v65
    %534 = vmatprep.subr.mxu0 0.0
    %535 = vmatpush1.msra.mxu0 %v64
    %536 = vmatprep.subr.mxu0 0.0
    %537 = vmatpush1.msra.mxu0 %v63
    %538 = vmatprep.subr.mxu0 0.0
    %539 = vmatpush1.msra.mxu0 %v62
    %540 = vmatprep.subr.mxu0 0.0
    %541 = vmatpush1.msra.mxu0 %v61
    %542 = vmatprep.subr.mxu0 0.0
    %543 = vmatpush1.msra.mxu0 %v60
    %544 = vmatprep.subr.mxu0 0.0
    %545 = vmatpush1.msra.mxu0 %v59
    %546 = vmatprep.subr.mxu0 0.0
    %547 = vmatpush1.msra.mxu0 %v58
    %548 = vmatprep.subr.mxu0 0.0
    %549 = vmatpush1.msra.mxu0 %v57
    %550 = vmatprep.subr.mxu0 0.0
    %551 = vmatpush2.msra.mxu0 0.0
    %552 = vmatprep.subr.mxu0 0.0
    %553 = vmatpush2.msra.mxu0 0.0
    %554 = vmatprep.subr.mxu0 0.0
    %555 = vmatpush2.msra.mxu0 0.0
    %556 = vmatprep.subr.mxu0 0.0
    %557 = vmatpush2.msra.mxu0 0.0
    %558 = vmatprep.subr.mxu0 0.0
    %559 = vmatpush2.msra.mxu0 0.0
    %560 = vmatprep.subr.mxu0 0.0
    %561 = vmatpush2.msra.mxu0 0.0
    %562 = vmatprep.subr.mxu0 0.0
    %563 = vmatpush2.msra.mxu0 0.0
    %564 = vmatprep.subr.mxu0 0.0
    %565 = vmatpush2.msra.mxu0 0.0
    %566 = vmatprep.subr.mxu0 0.0
    %567 = vmatpush2.msra.mxu0 0.0
    %568 = vmatprep.subr.mxu0 0.0
    %569 = vmatpush2.msra.mxu0 0.0
    %570 = vmatprep.subr.mxu0 0.0
    %571 = vmatpush2.msra.mxu0 0.0
    %572 = vmatprep.subr.mxu0 0.0
    %573 = vmatpush2.msra.mxu0 0.0
    %574 = vmatprep.subr.mxu0 0.0
    %575 = vmatpush2.msra.mxu0 0.0
    %576 = vmatprep.subr.mxu0 0.0
    %577 = vmatpush2.msra.mxu0 0.0
    %578 = vmatprep.subr.mxu0 0.0
    %579 = vmatpush2.msra.mxu0 0.0
    %580 = vmatprep.subr.mxu0 0.0
    %581 = vmatpush2.msra.mxu0 0.0
    %582 = vmatprep.mubr.f32.mxu0 0.0
    %583 = vmatmul.mubr.f32.gmra.mxu0 %v517
    %v584 = vpop.f32.mrf.mxu0
    %v585 = vadd.f32 %v73, %v584
    %v586 = vpop.f32.mrf.mxu0
    %587 = vdwg.mxu0
    %v588 = vmax.f32 %v585, 0.0
    %589 = vmatprep.subr.mxu0 0.0
    %590 = vmatpush1.msra.mxu0 %v72
    %591 = vmatprep.subr.mxu0 0.0
    %592 = vmatpush1.msra.mxu0 %v71
    %593 = vmatprep.subr.mxu0 0.0
    %594 = vmatpush1.msra.mxu0 %v70
    %595 = vmatprep.subr.mxu0 0.0
    %596 = vmatpush1.msra.mxu0 %v69
    %597 = vmatprep.subr.mxu0 0.0
    %598 = vmatpush1.msra.mxu0 %v68
    %599 = vmatprep.subr.mxu0 0.0
    %600 = vmatpush1.msra.mxu0 %v67
    %601 = vmatprep.subr.mxu0 0.0
    %602 = vmatpush1.msra.mxu0 %v66
    %603 = vmatprep.subr.mxu0 0.0
    %604 = vmatpush1.msra.mxu0 %v65
    %605 = vmatprep.subr.mxu0 0.0
    %606 = vmatpush1.msra.mxu0 %v64
    %607 = vmatprep.subr.mxu0 0.0
    %608 = vmatpush1.msra.mxu0 %v63
    %609 = vmatprep.subr.mxu0 0.0
    %610 = vmatpush1.msra.mxu0 %v62
    %611 = vmatprep.subr.mxu0 0.0
    %612 = vmatpush1.msra.mxu0 %v61
    %613 = vmatprep.subr.mxu0 0.0
    %614 = vmatpush1.msra.mxu0 %v60
    %615 = vmatprep.subr.mxu0 0.0
    %616 = vmatpush1.msra.mxu0 %v59
    %617 = vmatprep.subr.mxu0 0.0
    %618 = vmatpush1.msra.mxu0 %v58
    %619 = vmatprep.subr.mxu0 0.0
    %620 = vmatpush1.msra.mxu0 %v57
    %621 = vmatprep.subr.mxu0 0.0
    %622 = vmatpush2.msra.mxu0 0.0
    %623 = vmatprep.subr.mxu0 0.0
    %624 = vmatpush2.msra.mxu0 0.0
    %625 = vmatprep.subr.mxu0 0.0
    %626 = vmatpush2.msra.mxu0 0.0
    %627 = vmatprep.subr.mxu0 0.0
    %628 = vmatpush2.msra.mxu0 0.0
    %629 = vmatprep.subr.mxu0 0.0
    %630 = vmatpush2.msra.mxu0 0.0
    %631 = vmatprep.subr.mxu0 0.0
    %632 = vmatpush2.msra.mxu0 0.0
    %633 = vmatprep.subr.mxu0 0.0
    %634 = vmatpush2.msra.mxu0 0.0
    %635 = vmatprep.subr.mxu0 0.0
    %636 = vmatpush2.msra.mxu0 0.0
    %637 = vmatprep.subr.mxu0 0.0
    %638 = vmatpush2.msra.mxu0 0.0
    %639 = vmatprep.subr.mxu0 0.0
    %640 = vmatpush2.msra.mxu0 0.0
    %641 = vmatprep.subr.mxu0 0.0
    %642 = vmatpush2.msra.mxu0 0.0
    %643 = vmatprep.subr.mxu0 0.0
    %644 = vmatpush2.msra.mxu0 0.0
    %645 = vmatprep.subr.mxu0 0.0
    %646 = vmatpush2.msra.mxu0 0.0
    %647 = vmatprep.subr.mxu0 0.0
    %648 = vmatpush2.msra.mxu0 0.0
    %649 = vmatprep.subr.mxu0 0.0
    %650 = vmatpush2.msra.mxu0 0.0
    %651 = vmatprep.subr.mxu0 0.0
    %652 = vmatpush2.msra.mxu0 0.0
    %653 = vmatprep.mubr.f32.mxu0 0.0
    %654 = vmatmul.mubr.f32.gmra.mxu0 %v588
    %v655 = vpop.f32.mrf.mxu0
    %v656 = vadd.f32 %v73, %v655
    %v657 = vpop.f32.mrf.mxu0
    %658 = vdwg.mxu0
    %v659 = vmax.f32 %v656, 0.0
    %660 = vmatprep.subr.mxu0 0.0
    %661 = vmatpush1.msra.mxu0 %v72
    %662 = vmatprep.subr.mxu0 0.0
    %663 = vmatpush1.msra.mxu0 %v71
    %664 = vmatprep.subr.mxu0 0.0
    %665 = vmatpush1.msra.mxu0 %v70
    %666 = vmatprep.subr.mxu0 0.0
    %667 = vmatpush1.msra.mxu0 %v69
    %668 = vmatprep.subr.mxu0 0.0
    %669 = vmatpush1.msra.mxu0 %v68
    %670 = vmatprep.subr.mxu0 0.0
    %671 = vmatpush1.msra.mxu0 %v67
    %672 = vmatprep.subr.mxu0 0.0
    %673 = vmatpush1.msra.mxu0 %v66
    %674 = vmatprep.subr.mxu0 0.0
    %675 = vmatpush1.msra.mxu0 %v65
    %676 = vmatprep.subr.mxu0 0.0
    %677 = vmatpush1.msra.mxu0 %v64
    %678 = vmatprep.subr.mxu0 0.0
    %679 = vmatpush1.msra.mxu0 %v63
    %680 = vmatprep.subr.mxu0 0.0
    %681 = vmatpush1.msra.mxu0 %v62
    %682 = vmatprep.subr.mxu0 0.0
    %683 = vmatpush1.msra.mxu0 %v61
    %684 = vmatprep.subr.mxu0 0.0
    %685 = vmatpush1.msra.mxu0 %v60
    %686 = vmatprep.subr.mxu0 0.0
    %687 = vmatpush1.msra.mxu0 %v59
    %688 = vmatprep.subr.mxu0 0.0
    %689 = vmatpush1.msra.mxu0 %v58
    %690 = vmatprep.subr.mxu0 0.0
    %691 = vmatpush1.msra.mxu0 %v57
    %692 = vmatprep.subr.mxu0 0.0
    %693 = vmatpush2.msra.mxu0 0.0
    %694 = vmatprep.subr.mxu0 0.0
    %695 = vmatpush2.msra.mxu0 0.0
    %696 = vmatprep.subr.mxu0 0.0
    %697 = vmatpush2.msra.mxu0 0.0
    %698 = vmatprep.subr.mxu0 0.0
    %699 = vmatpush2.msra.mxu0 0.0
    %700 = vmatprep.subr.mxu0 0.0
    %701 = vmatpush2.msra.mxu0 0.0
    %702 = vmatprep.subr.mxu0 0.0
    %703 = vmatpush2.msra.mxu0 0.0
    %704 = vmatprep.subr.mxu0 0.0
    %705 = vmatpush2.msra.mxu0 0.0
    %706 = vmatprep.subr.mxu0 0.0
    %707 = vmatpush2.msra.mxu0 0.0
    %708 = vmatprep.subr.mxu0 0.0
    %709 = vmatpush2.msra.mxu0 0.0
    %710 = vmatprep.subr.mxu0 0.0
    %711 = vmatpush2.msra.mxu0 0.0
    %712 = vmatprep.subr.mxu0 0.0
    %713 = vmatpush2.msra.mxu0 0.0
    %714 = vmatprep.subr.mxu0 0.0
    %715 = vmatpush2.msra.mxu0 0.0
    %716 = vmatprep.subr.mxu0 0.0
    %717 = vmatpush2.msra.mxu0 0.0
    %718 = vmatprep.subr.mxu0 0.0
    %719 = vmatpush2.msra.mxu0 0.0
    %720 = vmatprep.subr.mxu0 0.0
    %721 = vmatpush2.msra.mxu0 0.0
    %722 = vmatprep.subr.mxu0 0.0
    %723 = vmatpush2.msra.mxu0 0.0
    %724 = vmatprep.mubr.f32.mxu0 0.0
    %725 = vmatmul.mubr.f32.gmra.mxu0 %v659
    %v726 = vpop.f32.mrf.mxu0
    %v727 = vadd.f32 %v73, %v726
    %v728 = vpop.f32.mrf.mxu0
    %729 = vdwg.mxu0
    %v730 = vmax.f32 %v727, 0.0
    %731 = vmatprep.subr.mxu0 0.0
    %732 = vmatpush1.msra.mxu0 %v72
    %733 = vmatprep.subr.mxu0 0.0
    %734 = vmatpush1.msra.mxu0 %v71
    %735 = vmatprep.subr.mxu0 0.0
    %736 = vmatpush1.msra.mxu0 %v70
    %737 = vmatprep.subr.mxu0 0.0
    %738 = vmatpush1.msra.mxu0 %v69
    %739 = vmatprep.subr.mxu0 0.0
    %740 = vmatpush1.msra.mxu0 %v68
    %741 = vmatprep.subr.mxu0 0.0
    %742 = vmatpush1.msra.mxu0 %v67
    %743 = vmatprep.subr.mxu0 0.0
    %744 = vmatpush1.msra.mxu0 %v66
    %745 = vmatprep.subr.mxu0 0.0
    %746 = vmatpush1.msra.mxu0 %v65
    %747 = vmatprep.subr.mxu0 0.0
    %748 = vmatpush1.msra.mxu0 %v64
    %749 = vmatprep.subr.mxu0 0.0
    %750 = vmatpush1.msra.mxu0 %v63
    %751 = vmatprep.subr.mxu0 0.0
    %752 = vmatpush1.msra.mxu0 %v62
    %753 = vmatprep.subr.mxu0 0.0
    %754 = vmatpush1.msra.mxu0 %v61
    %755 = vmatprep.subr.mxu0 0.0
    %756 = vmatpush1.msra.mxu0 %v60
    %757 = vmatprep.subr.mxu0 0.0
    %758 = vmatpush1.msra.mxu0 %v59
    %759 = vmatprep.subr.mxu0 0.0
    %760 = vmatpush1.msra.mxu0 %v58
    %761 = vmatprep.subr.mxu0 0.0
    %762 = vmatpush1.msra.mxu0 %v57
    %763 = vmatprep.subr.mxu0 0.0
    %764 = vmatpush2.msra.mxu0 0.0
    %765 = vmatprep.subr.mxu0 0.0
    %766 = vmatpush2.msra.mxu0 0.0
    %767 = vmatprep.subr.mxu0 0.0
    %768 = vmatpush2.msra.mxu0 0.0
    %769 = vmatprep.subr.mxu0 0.0
    %770 = vmatpush2.msra.mxu0 0.0
    %771 = vmatprep.subr.mxu0 0.0
    %772 = vmatpush2.msra.mxu0 0.0
    %773 = vmatprep.subr.mxu0 0.0
    %774 = vmatpush2.msra.mxu0 0.0
    %775 = vmatprep.subr.mxu0 0.0
    %776 = vmatpush2.msra.mxu0 0.0
    %777 = vmatprep.subr.mxu0 0.0
    %778 = vmatpush2.msra.mxu0 0.0
    %779 = vmatprep.subr.mxu0 0.0
    %780 = vmatpush2.msra.mxu0 0.0
    %781 = vmatprep.subr.mxu0 0.0
    %782 = vmatpush2.msra.mxu0 0.0
    %783 = vmatprep.subr.mxu0 0.0
    %784 = vmatpush2.msra.mxu0 0.0
    %785 = vmatprep.subr.mxu0 0.0
    %786 = vmatpush2.msra.mxu0 0.0
    %787 = vmatprep.subr.mxu0 0.0
    %788 = vmatpush2.msra.mxu0 0.0
    %789 = vmatprep.subr.mxu0 0.0
    %790 = vmatpush2.msra.mxu0 0.0
    %791 = vmatprep.subr.mxu0 0.0
    %792 = vmatpush2.msra.mxu0 0.0
    %793 = vmatprep.subr.mxu0 0.0
    %794 = vmatpush2.msra.mxu0 0.0
    %795 = vmatprep.mubr.f32.mxu0 0.0
    %796 = vmatmul.mubr.f32.gmra.mxu0 %v730
    %v797 = vpop.f32.mrf.mxu0
    %v798 = vadd.f32 %v73, %v797
    %v799 = vpop.f32.mrf.mxu0
    %800 = vdwg.mxu0
    %v801 = vmax.f32 %v798, 0.0
    %802 = vmatprep.subr.mxu0 0.0
    %803 = vmatpush1.msra.mxu0 %v72
    %804 = vmatprep.subr.mxu0 0.0
    %805 = vmatpush1.msra.mxu0 %v71
    %806 = vmatprep.subr.mxu0 0.0
    %807 = vmatpush1.msra.mxu0 %v70
    %808 = vmatprep.subr.mxu0 0.0
    %809 = vmatpush1.msra.mxu0 %v69
    %810 = vmatprep.subr.mxu0 0.0
    %811 = vmatpush1.msra.mxu0 %v68
    %812 = vmatprep.subr.mxu0 0.0
    %813 = vmatpush1.msra.mxu0 %v67
    %814 = vmatprep.subr.mxu0 0.0
    %815 = vmatpush1.msra.mxu0 %v66
    %816 = vmatprep.subr.mxu0 0.0
    %817 = vmatpush1.msra.mxu0 %v65
    %818 = vmatprep.subr.mxu0 0.0
    %819 = vmatpush1.msra.mxu0 %v64
    %820 = vmatprep.subr.mxu0 0.0
    %821 = vmatpush1.msra.mxu0 %v63
    %822 = vmatprep.subr.mxu0 0.0
    %823 = vmatpush1.msra.mxu0 %v62
    %824 = vmatprep.subr.mxu0 0.0
    %825 = vmatpush1.msra.mxu0 %v61
    %826 = vmatprep.subr.mxu0 0.0
    %827 = vmatpush1.msra.mxu0 %v60
    %828 = vmatprep.subr.mxu0 0.0
    %829 = vmatpush1.msra.mxu0 %v59
    %830 = vmatprep.subr.mxu0 0.0
    %831 = vmatpush1.msra.mxu0 %v58
    %832 = vmatprep.subr.mxu0 0.0
    %833 = vmatpush1.msra.mxu0 %v57
    %834 = vmatprep.subr.mxu0 0.0
    %835 = vmatpush2.msra.mxu0 0.0
    %836 = vmatprep.subr.mxu0 0.0
    %837 = vmatpush2.msra.mxu0 0.0
    %838 = vmatprep.subr.mxu0 0.0
    %839 = vmatpush2.msra.mxu0 0.0
    %840 = vmatprep.subr.mxu0 0.0
    %841 = vmatpush2.msra.mxu0 0.0
    %842 = vmatprep.subr.mxu0 0.0
    %843 = vmatpush2.msra.mxu0 0.0
    %844 = vmatprep.subr.mxu0 0.0
    %845 = vmatpush2.msra.mxu0 0.0
    %846 = vmatprep.subr.mxu0 0.0
    %847 = vmatpush2.msra.mxu0 0.0
    %848 = vmatprep.subr.mxu0 0.0
    %849 = vmatpush2.msra.mxu0 0.0
    %850 = vmatprep.subr.mxu0 0.0
    %851 = vmatpush2.msra.mxu0 0.0
    %852 = vmatprep.subr.mxu0 0.0
    %853 = vmatpush2.msra.mxu0 0.0
    %854 = vmatprep.subr.mxu0 0.0
    %855 = vmatpush2.msra.mxu0 0.0
    %856 = vmatprep.subr.mxu0 0.0
    %857 = vmatpush2.msra.mxu0 0.0
    %858 = vmatprep.subr.mxu0 0.0
    %859 = vmatpush2.msra.mxu0 0.0
    %860 = vmatprep.subr.mxu0 0.0
    %861 = vmatpush2.msra.mxu0 0.0
    %862 = vmatprep.subr.mxu0 0.0
    %863 = vmatpush2.msra.mxu0 0.0
    %864 = vmatprep.subr.mxu0 0.0
    %865 = vmatpush2.msra.mxu0 0.0
    %866 = vmatprep.mubr.f32.mxu0 0.0
    %867 = vmatmul.mubr.f32.gmra.mxu0 %v801
    %v868 = vpop.f32.mrf.mxu0
    %v869 = vadd.f32 %v73, %v868
    %v870 = vpop.f32.mrf.mxu0
    %871 = vdwg.mxu0
    %v872 = vmax.f32 %v869, 0.0
    %873 = vmatprep.subr.mxu0 0.0
    %874 = vmatpush1.msra.mxu0 %v90
    %875 = vmatprep.subr.mxu0 0.0
    %876 = vmatpush1.msra.mxu0 %v89
    %877 = vmatprep.subr.mxu0 0.0
    %878 = vmatpush1.msra.mxu0 %v88
    %879 = vmatprep.subr.mxu0 0.0
    %880 = vmatpush1.msra.mxu0 %v87
    %881 = vmatprep.subr.mxu0 0.0
    %882 = vmatpush1.msra.mxu0 %v86
    %883 = vmatprep.subr.mxu0 0.0
    %884 = vmatpush1.msra.mxu0 %v85
    %885 = vmatprep.subr.mxu0 0.0
    %886 = vmatpush1.msra.mxu0 %v84
    %887 = vmatprep.subr.mxu0 0.0
    %888 = vmatpush1.msra.mxu0 %v83
    %889 = vmatprep.subr.mxu0 0.0
    %890 = vmatpush1.msra.mxu0 %v82
    %891 = vmatprep.subr.mxu0 0.0
    %892 = vmatpush1.msra.mxu0 %v81
    %893 = vmatprep.subr.mxu0 0.0
    %894 = vmatpush1.msra.mxu0 %v80
    %895 = vmatprep.subr.mxu0 0.0
    %896 = vmatpush1.msra.mxu0 %v79
    %897 = vmatprep.subr.mxu0 0.0
    %898 = vmatpush1.msra.mxu0 %v78
    %899 = vmatprep.subr.mxu0 0.0
    %900 = vmatpush1.msra.mxu0 %v77
    %901 = vmatprep.subr.mxu0 0.0
    %902 = vmatpush1.msra.mxu0 %v76
    %903 = vmatprep.subr.mxu0 0.0
    %904 = vmatpush1.msra.mxu0 %v75
    %905 = vmatprep.subr.mxu0 0.0
    %906 = vmatpush2.msra.mxu0 0.0
    %907 = vmatprep.subr.mxu0 0.0
    %908 = vmatpush2.msra.mxu0 0.0
    %909 = vmatprep.subr.mxu0 0.0
    %910 = vmatpush2.msra.mxu0 0.0
    %911 = vmatprep.subr.mxu0 0.0
    %912 = vmatpush2.msra.mxu0 0.0
    %913 = vmatprep.subr.mxu0 0.0
    %914 = vmatpush2.msra.mxu0 0.0
    %915 = vmatprep.subr.mxu0 0.0
    %916 = vmatpush2.msra.mxu0 0.0
    %917 = vmatprep.subr.mxu0 0.0
    %918 = vmatpush2.msra.mxu0 0.0
    %919 = vmatprep.subr.mxu0 0.0
    %920 = vmatpush2.msra.mxu0 0.0
    %921 = vmatprep.subr.mxu0 0.0
    %922 = vmatpush2.msra.mxu0 0.0
    %923 = vmatprep.subr.mxu0 0.0
    %924 = vmatpush2.msra.mxu0 0.0
    %925 = vmatprep.subr.mxu0 0.0
    %926 = vmatpush2.msra.mxu0 0.0
    %927 = vmatprep.subr.mxu0 0.0
    %928 = vmatpush2.msra.mxu0 0.0
    %929 = vmatprep.subr.mxu0 0.0
    %930 = vmatpush2.msra.mxu0 0.0
    %931 = vmatprep.subr.mxu0 0.0
    %932 = vmatpush2.msra.mxu0 0.0
    %933 = vmatprep.subr.mxu0 0.0
    %934 = vmatpush2.msra.mxu0 0.0
    %935 = vmatprep.subr.mxu0 0.0
    %936 = vmatpush2.msra.mxu0 0.0
    %937 = vmatprep.mubr.f32.mxu0 0.0
    %938 = vmatmul.mubr.f32.gmra.mxu0 %v872
    %v939 = vpop.f32.mrf.mxu0
    %v940 = vadd.f32 %v91, %v939
    %v941 = vpop.f32.mrf.mxu0
    %942 = vdwg.mxu0
    %943 = vst [vmem:[#allocation7] sm:$0xff] %v940
    // Predicated region
    $region18: #{tpu_custom_call.1} parent=1 // pred_check
      _
    $region19: #{tpu_custom_call.1} parent=1 // pred_check_branch
      %945 = sbr.rel (0) target = $region21
    $region20: #{tpu_custom_call.1} parent=1 // pred_region
      %s947 = ssub.s32 128, 128
      %948 = vsyncadd [#allocation4], %s947
      %s950 = sshll.u32 [#allocation7], 4
      %s951 = int_to_ptr.vmem [resolvable:$true] %s950
      %953 = dma.vmem_to_hbm [thread:$0]  %s951, 128, %s2, [#allocation4]
    $region21: #{tpu_custom_call.1} parent=1 // pred_fallthru
      _
    // Predicated region
    $region22: #{tpu_custom_call.1} parent=1 // pred_check
      _
    $region23: #{tpu_custom_call.1} parent=1 // pred_check_branch
      %955 = sbr.rel (0) target = $region25
    $region24: #{tpu_custom_call.1} parent=1 // pred_region
      %956 = dma.done [#allocation4], 128
    $region25: #{tpu_custom_call.1} parent=1 // pred_fallthru
      _
    %957 = vsyncpa [#allocation3], 1
    %958 = vsyncpa [#allocation6], 1
    %959 = vsyncpa [#allocation4], 1

</llo_original>
